<compile_context>
chip_gen: v6e
topology: v6e:2x2x1
jax: 0.10.0
libtpu: 0.0.40
codegen_flags: <defaults>
</compile_context>

<pallas_src>
import functools

import jax
import jax.numpy as jnp
from jax.experimental import pallas as pl
from jax.experimental.pallas import tpu as pltpu


def _verifier_kernel(x1_ref, x2_ref, w1_ref, w2_ref, b_ref, o_ref):
    # x1_ref, x2_ref : (TM//128, 128, E)  activation tiles (native dtype)
    # w1_ref, w2_ref : (1, 1, E)          f32 weight rows (VMEM-resident)
    # b_ref          : (1,)               f32 bias scalar in SMEM
    # o_ref          : (TM//128, 128)     lane-dense verification scores
    x1 = x1_ref[...].astype(jnp.float32)
    x2 = x2_ref[...].astype(jnp.float32)
    # Per-row dot product with the split weight: reduce over the lane (E) axis.
    acc = jnp.sum(x1 * w1_ref[...] + x2 * w2_ref[...], axis=-1)  # (TM//128, 128)
    o_ref[...] = jax.nn.sigmoid(acc + b_ref[0]).astype(o_ref.dtype)


@functools.partial(jax.jit, static_argnames=("tm_max",))
def speculation_verifier(speculated_output, actual_output, weight, bias,
                         *, tm_max=4096):
    """speculated_output, actual_output: (B, S, E)
       weight: (1, 2*E) (PyTorch nn.Linear layout: (out_features, in_features))
       bias:   (1,)
       returns: (B, S, 1) verification scores (same dtype as the activations).
    """
    B, S, E = speculated_output.shape
    M = B * S
    out_dtype = speculated_output.dtype

    # Split the concat weight into its two halves as lane-dense (1, 1, E) rows.
    w1 = weight[:, :E].reshape(1, 1, E).astype(jnp.float32)
    w2 = weight[:, E:].reshape(1, 1, E).astype(jnp.float32)
    b = bias.reshape(1).astype(jnp.float32)

    # Row tiling: pad M up to a lane-friendly multiple and pick the tile size.
    # tm_max is a multiple of 1024 so (tm // 128) % 8 == 0 whenever grid > 1,
    # satisfying the (8, 128) block divisibility rule on the output.
    if M <= tm_max:
        m_pad = 128 * pl.cdiv(M, 128)
        tm = m_pad
    else:
        tm = tm_max
        m_pad = tm * pl.cdiv(M, tm)
    rows = m_pad // 128        # groups of 128 tokens
    tile_rows = tm // 128      # groups of 128 tokens per grid step

    def to_tiles(x):
        x = x.reshape(M, E)
        if m_pad != M:
            x = jnp.pad(x, ((0, m_pad - M), (0, 0)))   # ragged tail -> zeros
        return x.reshape(rows, 128, E)

    x1 = to_tiles(speculated_output)
    x2 = to_tiles(actual_output)

    out = pl.pallas_call(
        _verifier_kernel,
        out_shape=jax.ShapeDtypeStruct((rows, 128), out_dtype),
        grid_spec=pltpu.PrefetchScalarGridSpec(
            num_scalar_prefetch=0,
            grid=(m_pad // tm,),
            in_specs=[
                pl.BlockSpec((tile_rows, 128, E), lambda i: (i, 0, 0)),
                pl.BlockSpec((tile_rows, 128, E), lambda i: (i, 0, 0)),
                pl.BlockSpec((1, 1, E), lambda i: (0, 0, 0)),   # stays resident
                pl.BlockSpec((1, 1, E), lambda i: (0, 0, 0)),   # stays resident
                pl.BlockSpec(memory_space=pltpu.SMEM),          # bias scalar
            ],
            out_specs=pl.BlockSpec((tile_rows, 128), lambda i: (i, 0)),
        ),
        compiler_params=pltpu.CompilerParams(
            # Independent row tiles: lets v7x shard the grid across both TCs.
            dimension_semantics=("parallel",),
            # Double-buffered input footprint ~ 2*2*tm*E*4 B (~8 MiB @ tm=4096);
            # explicit limit leaves headroom on v7x's smaller (64 MiB) VMEM.
            vmem_limit_bytes=32 * 1024 * 1024,
        ),
    )(x1, x2, w1, w2, b)

    return out.reshape(m_pad)[:M].reshape(B, S, 1)


if __name__ == "__main__":
    n_embed = 128
    key = jax.random.PRNGKey(0)
    k1, k2, k3, k4, k5, k6 = jax.random.split(key, 6)

    # Deterministic nn.Linear(2*E, 1) init: U(-1/sqrt(fan_in), 1/sqrt(fan_in)).
    fan_in = 2 * n_embed
    bound = 1.0 / float(fan_in) ** 0.5
    weight = jax.random.uniform(k3, (1, 2 * n_embed), jnp.float32, -bound, bound)
    bias = jax.random.uniform(k4, (1,), jnp.float32, -bound, bound)

    def reference(spec, act):
        combined = jnp.concatenate([spec, act], axis=-1)
        return jax.nn.sigmoid(combined @ weight.T + bias)

    # Small shape matching the demo module (batch=2, seq=8, n_embed=128).
    B, S = 2, 8
    speculated = jax.random.normal(k1, (B, S, n_embed), dtype=jnp.float32)
    actual = jax.random.normal(k2, (B, S, n_embed), dtype=jnp.float32)
    score = jax.block_until_ready(
        speculation_verifier(speculated, actual, weight, bias))
    assert score.shape == (B, S, 1)
    assert jnp.allclose(score, reference(speculated, actual), atol=1e-5, rtol=1e-5)

    # A second shape exercising the multi-tile grid + ragged-row padding path.
    B2, S2 = 3, 3000   # M = 9000 -> tm = 4096, grid = (3,), padded tail
    speculated2 = jax.random.normal(k5, (B2, S2, n_embed), dtype=jnp.float32)
    actual2 = jax.random.normal(k6, (B2, S2, n_embed), dtype=jnp.float32)
    score2 = jax.block_until_ready(
        speculation_verifier(speculated2, actual2, weight, bias))
    assert score2.shape == (B2, S2, 1)
    assert jnp.allclose(score2, reference(speculated2, actual2),
                        atol=1e-5, rtol=1e-5)

    print("KERNEL_OK")
</pallas_src>

<mosaic_0001>
module attributes {stable_mosaic.version = 11 : i64} {
  func.func @_verifier_kernel(%arg0: i32, %arg1: memref<1x128x128xf32, #tpu.memory_space<vmem>>, %arg2: memref<1x128x128xf32, #tpu.memory_space<vmem>>, %arg3: memref<1x1x128xf32, #tpu.memory_space<vmem>>, %arg4: memref<1x1x128xf32, #tpu.memory_space<vmem>>, %arg5: memref<1xf32, #tpu.memory_space<smem>>, %arg6: memref<1x128xf32, #tpu.memory_space<vmem>>) attributes {dimension_semantics = [#tpu.dimension_semantics<parallel>], iteration_bounds = array<i64: 1>, scalar_prefetch = 0 : i64, scratch_operands = 0 : i64, tpu.core_type = #tpu.core_type<tc>, window_params = [{transform_indices = @transform_0, window_bounds = array<i64: 1, 128, 128>}, {transform_indices = @transform_1, window_bounds = array<i64: 1, 128, 128>}, {pipeline_mode = #tpu.pipeline_mode<synchronous>, transform_indices = @transform_2, window_bounds = array<i64: 1, 1, 128>}, {pipeline_mode = #tpu.pipeline_mode<synchronous>, transform_indices = @transform_3, window_bounds = array<i64: 1, 1, 128>}, {transform_indices = @transform_4, window_bounds = array<i64: 1>}, {transform_indices = @transform_5, window_bounds = array<i64: 1, 128>}]} {
    %c0 = arith.constant 0 : index
    %c0_0 = arith.constant 0 : index
    %c0_1 = arith.constant 0 : index
    %0 = vector.load %arg1[%c0, %c0_0, %c0_1] : memref<1x128x128xf32, #tpu.memory_space<vmem>>, vector<1x128x128xf32>
    %c0_2 = arith.constant 0 : index
    %c0_3 = arith.constant 0 : index
    %c0_4 = arith.constant 0 : index
    %1 = vector.load %arg2[%c0_2, %c0_3, %c0_4] : memref<1x128x128xf32, #tpu.memory_space<vmem>>, vector<1x128x128xf32>
    %c0_5 = arith.constant 0 : index
    %c0_6 = arith.constant 0 : index
    %c0_7 = arith.constant 0 : index
    %2 = vector.load %arg3[%c0_5, %c0_6, %c0_7] : memref<1x1x128xf32, #tpu.memory_space<vmem>>, vector<1x1x128xf32>
    %3 = vector.broadcast %2 : vector<1x1x128xf32> to vector<1x128x128xf32>
    %4 = arith.mulf %0, %3 : vector<1x128x128xf32>
    %c0_8 = arith.constant 0 : index
    %c0_9 = arith.constant 0 : index
    %c0_10 = arith.constant 0 : index
    %5 = vector.load %arg4[%c0_8, %c0_9, %c0_10] : memref<1x1x128xf32, #tpu.memory_space<vmem>>, vector<1x1x128xf32>
    %6 = vector.broadcast %5 : vector<1x1x128xf32> to vector<1x128x128xf32>
    %7 = arith.mulf %1, %6 : vector<1x128x128xf32>
    %8 = arith.addf %4, %7 : vector<1x128x128xf32>
    %cst = arith.constant dense<0.000000e+00> : vector<1x128xf32>
    %9 = vector.multi_reduction <add>, %8, %cst [2] : vector<1x128x128xf32> to vector<1x128xf32>
    %c0_11 = arith.constant 0 : index
    %10 = memref.load %arg5[%c0_11] : memref<1xf32, #tpu.memory_space<smem>>
    %11 = vector.broadcast %10 : f32 to vector<1x128xf32>
    %12 = arith.addf %9, %11 : vector<1x128xf32>
    %13 = arith.negf %12 : vector<1x128xf32>
    %14 = math.exp %13 : vector<1x128xf32>
    %cst_12 = arith.constant 1.000000e+00 : f32
    %15 = vector.broadcast %cst_12 : f32 to vector<1x128xf32>
    %16 = arith.addf %15, %14 : vector<1x128xf32>
    %17 = arith.divf %15, %16 : vector<1x128xf32>
    %c0_13 = arith.constant 0 : index
    %c0_14 = arith.constant 0 : index
    %18 = vector.load %arg6[%c0_13, %c0_14] : memref<1x128xf32, #tpu.memory_space<vmem>>, vector<1x128xf32>
    tpu.vector_store %arg6[%c0_13, %c0_14], %17 {strides = array<i32>} : memref<1x128xf32, #tpu.memory_space<vmem>>, vector<1x128xf32>,
    return
  }
  func.func @transform_0(%arg0: i32) -> (i32, i32, i32) {
    %c0_i32 = arith.constant 0 : i32
    %c0_i32_0 = arith.constant 0 : i32
    %c0_i32_1 = arith.constant 0 : i32
    return %arg0, %c0_i32, %c0_i32_0 : i32, i32, i32
  }
  func.func @transform_1(%arg0: i32) -> (i32, i32, i32) {
    %c0_i32 = arith.constant 0 : i32
    %c0_i32_0 = arith.constant 0 : i32
    %c0_i32_1 = arith.constant 0 : i32
    return %arg0, %c0_i32, %c0_i32_0 : i32, i32, i32
  }
  func.func @transform_2(%arg0: i32) -> (i32, i32, i32) {
    %c0_i32 = arith.constant 0 : i32
    %c0_i32_0 = arith.constant 0 : i32
    %c0_i32_1 = arith.constant 0 : i32
    %c0_i32_2 = arith.constant 0 : i32
    return %c0_i32, %c0_i32_0, %c0_i32_1 : i32, i32, i32
  }
  func.func @transform_3(%arg0: i32) -> (i32, i32, i32) {
    %c0_i32 = arith.constant 0 : i32
    %c0_i32_0 = arith.constant 0 : i32
    %c0_i32_1 = arith.constant 0 : i32
    %c0_i32_2 = arith.constant 0 : i32
    return %c0_i32, %c0_i32_0, %c0_i32_1 : i32, i32, i32
  }
  func.func @transform_4(%arg0: i32) -> i32 {
    %c0_i32 = arith.constant 0 : i32
    %c0_i32_0 = arith.constant 0 : i32
    return %c0_i32 : i32
  }
  func.func @transform_5(%arg0: i32) -> (i32, i32) {
    %c0_i32 = arith.constant 0 : i32
    %c0_i32_0 = arith.constant 0 : i32
    return %arg0, %c0_i32 : i32, i32
  }
}

</mosaic_0001>

<llo_original>
// kernel: speculation_verifier.1
$region0: #{speculation_verifier.1}
  #allocation0 [shape = 'u32[]', space=smem, size = 0x4, offset = 0x4, fixed_abs, tag = 'smem constant byte address 0x4 - core index']
  #allocation1 [shape = 'u32[144,128]{1,0:T(1,128)}', space=vmem, size = 0x12000, scoped, tag = 'internal scratch']
  #allocation2 [shape = 'f32[1]{0:T(128)S(6)}', space=smem, size = 0x200, scoped, tag = 'scoped memory for speculation_verifier.1']
  %s0 = inlined_call_operand.vmem [shape: f32[1,128,128], index: 0, kind: input, shape index: {}]
  %s1 = inlined_call_operand.vmem [shape: f32[1,128,128], index: 1, kind: input, shape index: {}]
  %s2 = inlined_call_operand.vmem [shape: f32[1,1,128], index: 2, kind: input, shape index: {}]
  %s3 = inlined_call_operand.vmem [shape: f32[1,1,128], index: 3, kind: input, shape index: {}]
  %s4 = inlined_call_operand.<no memory space> [shape: f32[1], index: 4, kind: input, shape index: {}]
  %s5 = inlined_call_operand.vmem [shape: f32[1,128], index: 5, kind: output, shape index: {}]
  %s6 = sld [smem:[#allocation0]]
  $region30: #{speculation_verifier.1} parent=0
    _
  %s8 = ssub.s32 1, %s6
  %s9 = scalar_select 0, %s8, %s6
  %10 = sst [smem:[#allocation2]] %s4
  // Predicated region
  $region2: #{speculation_verifier.1} parent=0 // pred_check
    _
  $region3: #{speculation_verifier.1} parent=0 // pred_check_branch
    %12 = sbr.rel (0) target = $region5
  $region4: #{speculation_verifier.1} parent=0 // pred_region
    _
  $region5: #{speculation_verifier.1} parent=0 // pred_fallthru
    _
  // Predicated region
  $region6: #{speculation_verifier.1} parent=0 // pred_check
    _
  $region7: #{speculation_verifier.1} parent=0 // pred_check_branch
    %14 = sbr.rel (0) target = $region9
  $region8: #{speculation_verifier.1} parent=0 // pred_region
    _
  $region9: #{speculation_verifier.1} parent=0 // pred_fallthru
    _
  // Predicated region
  $region10: #{speculation_verifier.1} parent=0 // pred_check
    _
  $region11: #{speculation_verifier.1} parent=0 // pred_check_branch
    %16 = sbr.rel (0) target = $region13
  $region12: #{speculation_verifier.1} parent=0 // pred_region
    _
  $region13: #{speculation_verifier.1} parent=0 // pred_fallthru
    _
  // Predicated region
  $region14: #{speculation_verifier.1} parent=0 // pred_check
    _
  $region15: #{speculation_verifier.1} parent=0 // pred_check_branch
    %18 = sbr.rel (0) target = $region17
  $region16: #{speculation_verifier.1} parent=0 // pred_region
    _
  $region17: #{speculation_verifier.1} parent=0 // pred_fallthru
    _
  // Predicated region
  $region18: #{speculation_verifier.1} parent=0 // pred_check
    _
  $region19: #{speculation_verifier.1} parent=0 // pred_check_branch
    %20 = sbr.rel (0) target = $region21
  $region20: #{speculation_verifier.1} parent=0 // pred_region
    _
  $region21: #{speculation_verifier.1} parent=0 // pred_fallthru
    _
  %v21 = vld [vmem:[%s0] sm:$0xff]
  %v22 = vld [vmem:[%s0 + $0x8] sm:$0xff]
  %v23 = vld [vmem:[%s0 + $0x10] sm:$0xff]
  %v24 = vld [vmem:[%s0 + $0x18] sm:$0xff]
  %v25 = vld [vmem:[%s0 + $0x20] sm:$0xff]
  %v26 = vld [vmem:[%s0 + $0x28] sm:$0xff]
  %v27 = vld [vmem:[%s0 + $0x30] sm:$0xff]
  %v28 = vld [vmem:[%s0 + $0x38] sm:$0xff]
  %v29 = vld [vmem:[%s0 + $0x40] sm:$0xff]
  %v30 = vld [vmem:[%s0 + $0x48] sm:$0xff]
  %v31 = vld [vmem:[%s0 + $0x50] sm:$0xff]
  %v32 = vld [vmem:[%s0 + $0x58] sm:$0xff]
  %v33 = vld [vmem:[%s0 + $0x60] sm:$0xff]
  %v34 = vld [vmem:[%s0 + $0x68] sm:$0xff]
  %v35 = vld [vmem:[%s0 + $0x70] sm:$0xff]
  %v36 = vld [vmem:[%s0 + $0x78] sm:$0xff]
  %v37 = vld [vmem:[%s1] sm:$0xff]
  %v38 = vld [vmem:[%s1 + $0x8] sm:$0xff]
  %v39 = vld [vmem:[%s1 + $0x10] sm:$0xff]
  %v40 = vld [vmem:[%s1 + $0x18] sm:$0xff]
  %v41 = vld [vmem:[%s1 + $0x20] sm:$0xff]
  %v42 = vld [vmem:[%s1 + $0x28] sm:$0xff]
  %v43 = vld [vmem:[%s1 + $0x30] sm:$0xff]
  %v44 = vld [vmem:[%s1 + $0x38] sm:$0xff]
  %v45 = vld [vmem:[%s1 + $0x40] sm:$0xff]
  %v46 = vld [vmem:[%s1 + $0x48] sm:$0xff]
  %v47 = vld [vmem:[%s1 + $0x50] sm:$0xff]
  %v48 = vld [vmem:[%s1 + $0x58] sm:$0xff]
  %v49 = vld [vmem:[%s1 + $0x60] sm:$0xff]
  %v50 = vld [vmem:[%s1 + $0x68] sm:$0xff]
  %v51 = vld [vmem:[%s1 + $0x70] sm:$0xff]
  %v52 = vld [vmem:[%s1 + $0x78] sm:$0xff]
  %v53 = vld [vmem:[%s2] sm:$0x1]
  %v55 = vlaneseq
  %v56 = vshrl.u32 %v55, 7
  %v57 = vsub.s32 0, %v56
  %v58 = vrot.slane %v53, %v57
  %v60 = vmul.f32 %v21, %v58
  %v61 = vmul.f32 %v22, %v58
  %v62 = vmul.f32 %v23, %v58
  %v63 = vmul.f32 %v24, %v58
  %v64 = vmul.f32 %v25, %v58
  %v65 = vmul.f32 %v26, %v58
  %v66 = vmul.f32 %v27, %v58
  %v67 = vmul.f32 %v28, %v58
  %v68 = vmul.f32 %v29, %v58
  %v69 = vmul.f32 %v30, %v58
  %v70 = vmul.f32 %v31, %v58
  %v71 = vmul.f32 %v32, %v58
  %v72 = vmul.f32 %v33, %v58
  %v73 = vmul.f32 %v34, %v58
  %v74 = vmul.f32 %v35, %v58
  %v75 = vmul.f32 %v36, %v58
  %v76 = vld [vmem:[%s3] sm:$0x1]
  %v78 = vlaneseq
  %v79 = vshrl.u32 %v78, 7
  %v80 = vsub.s32 0, %v79
  %v81 = vrot.slane %v76, %v80
  %v83 = vmul.f32 %v37, %v81
  %v84 = vmul.f32 %v38, %v81
  %v85 = vmul.f32 %v39, %v81
  %v86 = vmul.f32 %v40, %v81
  %v87 = vmul.f32 %v41, %v81
  %v88 = vmul.f32 %v42, %v81
  %v89 = vmul.f32 %v43, %v81
  %v90 = vmul.f32 %v44, %v81
  %v91 = vmul.f32 %v45, %v81
  %v92 = vmul.f32 %v46, %v81
  %v93 = vmul.f32 %v47, %v81
  %v94 = vmul.f32 %v48, %v81
  %v95 = vmul.f32 %v49, %v81
  %v96 = vmul.f32 %v50, %v81
  %v97 = vmul.f32 %v51, %v81
  %v98 = vmul.f32 %v52, %v81
  %v99 = vadd.f32 %v60, %v83
  %v100 = vadd.f32 %v61, %v84
  %v101 = vadd.f32 %v62, %v85
  %v102 = vadd.f32 %v63, %v86
  %v103 = vadd.f32 %v64, %v87
  %v104 = vadd.f32 %v65, %v88
  %v105 = vadd.f32 %v66, %v89
  %v106 = vadd.f32 %v67, %v90
  %v107 = vadd.f32 %v68, %v91
  %v108 = vadd.f32 %v69, %v92
  %v109 = vadd.f32 %v70, %v93
  %v110 = vadd.f32 %v71, %v94
  %v111 = vadd.f32 %v72, %v95
  %v112 = vadd.f32 %v73, %v96
  %v113 = vadd.f32 %v74, %v97
  %v114 = vadd.f32 %v75, %v98
  %115 = vadd.xlane.f32.xlu0 %v99
  %v116 = vpop.xlane.xlu0 %115
  %117 = vadd.xlane.f32.xlu0 %v100
  %v118 = vpop.xlane.xlu0 %117
  %119 = vadd.xlane.f32.xlu0 %v101
  %v120 = vpop.xlane.xlu0 %119
  %121 = vadd.xlane.f32.xlu0 %v102
  %v122 = vpop.xlane.xlu0 %121
  %123 = vadd.xlane.f32.xlu0 %v103
  %v124 = vpop.xlane.xlu0 %123
  %125 = vadd.xlane.f32.xlu0 %v104
  %v126 = vpop.xlane.xlu0 %125
  %127 = vadd.xlane.f32.xlu0 %v105
  %v128 = vpop.xlane.xlu0 %127
  %129 = vadd.xlane.f32.xlu0 %v106
  %v130 = vpop.xlane.xlu0 %129
  %131 = vadd.xlane.f32.xlu0 %v107
  %v132 = vpop.xlane.xlu0 %131
  %133 = vadd.xlane.f32.xlu0 %v108
  %v134 = vpop.xlane.xlu0 %133
  %135 = vadd.xlane.f32.xlu0 %v109
  %v136 = vpop.xlane.xlu0 %135
  %137 = vadd.xlane.f32.xlu0 %v110
  %v138 = vpop.xlane.xlu0 %137
  %139 = vadd.xlane.f32.xlu0 %v111
  %v140 = vpop.xlane.xlu0 %139
  %141 = vadd.xlane.f32.xlu0 %v112
  %v142 = vpop.xlane.xlu0 %141
  %143 = vadd.xlane.f32.xlu0 %v113
  %v144 = vpop.xlane.xlu0 %143
  %145 = vadd.xlane.f32.xlu0 %v114
  %v146 = vpop.xlane.xlu0 %145
  %s147 = sld [smem:[#allocation2]]
  %v148 = vstv %s147
  %v149 = vadd.f32 %v116, %v148
  %v150 = vadd.f32 %v118, %v148
  %v151 = vadd.f32 %v120, %v148
  %v152 = vadd.f32 %v122, %v148
  %v153 = vadd.f32 %v124, %v148
  %v154 = vadd.f32 %v126, %v148
  %v155 = vadd.f32 %v128, %v148
  %v156 = vadd.f32 %v130, %v148
  %v157 = vadd.f32 %v132, %v148
  %v158 = vadd.f32 %v134, %v148
  %v159 = vadd.f32 %v136, %v148
  %v160 = vadd.f32 %v138, %v148
  %v161 = vadd.f32 %v140, %v148
  %v162 = vadd.f32 %v142, %v148
  %v163 = vadd.f32 %v144, %v148
  %v164 = vadd.f32 %v146, %v148
  %v165 = vxor.u32 %v149, 2147483648
  %v166 = vxor.u32 %v150, 2147483648
  %v167 = vxor.u32 %v151, 2147483648
  %v168 = vxor.u32 %v152, 2147483648
  %v169 = vxor.u32 %v153, 2147483648
  %v170 = vxor.u32 %v154, 2147483648
  %v171 = vxor.u32 %v155, 2147483648
  %v172 = vxor.u32 %v156, 2147483648
  %v173 = vxor.u32 %v157, 2147483648
  %v174 = vxor.u32 %v158, 2147483648
  %v175 = vxor.u32 %v159, 2147483648
  %v176 = vxor.u32 %v160, 2147483648
  %v177 = vxor.u32 %v161, 2147483648
  %v178 = vxor.u32 %v162, 2147483648
  %v179 = vxor.u32 %v163, 2147483648
  %v180 = vxor.u32 %v164, 2147483648
  %v181 = vmul.f32 %v165, 1.442695
  %v182 = vpow.pop %v181
  %v183 = vmul.f32 %v166, 1.442695
  %v184 = vpow.pop %v183
  %v185 = vmul.f32 %v167, 1.442695
  %v186 = vpow.pop %v185
  %v187 = vmul.f32 %v168, 1.442695
  %v188 = vpow.pop %v187
  %v189 = vmul.f32 %v169, 1.442695
  %v190 = vpow.pop %v189
  %v191 = vmul.f32 %v170, 1.442695
  %v192 = vpow.pop %v191
  %v193 = vmul.f32 %v171, 1.442695
  %v194 = vpow.pop %v193
  %v195 = vmul.f32 %v172, 1.442695
  %v196 = vpow.pop %v195
  %v197 = vmul.f32 %v173, 1.442695
  %v198 = vpow.pop %v197
  %v199 = vmul.f32 %v174, 1.442695
  %v200 = vpow.pop %v199
  %v201 = vmul.f32 %v175, 1.442695
  %v202 = vpow.pop %v201
  %v203 = vmul.f32 %v176, 1.442695
  %v204 = vpow.pop %v203
  %v205 = vmul.f32 %v177, 1.442695
  %v206 = vpow.pop %v205
  %v207 = vmul.f32 %v178, 1.442695
  %v208 = vpow.pop %v207
  %v209 = vmul.f32 %v179, 1.442695
  %v210 = vpow.pop %v209
  %v211 = vmul.f32 %v180, 1.442695
  %v212 = vpow.pop %v211
  %v213 = vadd.f32 %v182, 1.0
  %v214 = vadd.f32 %v184, 1.0
  %v215 = vadd.f32 %v186, 1.0
  %v216 = vadd.f32 %v188, 1.0
  %v217 = vadd.f32 %v190, 1.0
  %v218 = vadd.f32 %v192, 1.0
  %v219 = vadd.f32 %v194, 1.0
  %v220 = vadd.f32 %v196, 1.0
  %v221 = vadd.f32 %v198, 1.0
  %v222 = vadd.f32 %v200, 1.0
  %v223 = vadd.f32 %v202, 1.0
  %v224 = vadd.f32 %v204, 1.0
  %v225 = vadd.f32 %v206, 1.0
  %v226 = vadd.f32 %v208, 1.0
  %v227 = vadd.f32 %v210, 1.0
  %v228 = vadd.f32 %v212, 1.0
  %v229 = vrcp.pop %v213
  %v230 = vmul.f32 1.0, %v229
  %v231 = vrcp.pop %v214
  %v232 = vmul.f32 1.0, %v231
  %v233 = vrcp.pop %v215
  %v234 = vmul.f32 1.0, %v233
  %v235 = vrcp.pop %v216
  %v236 = vmul.f32 1.0, %v235
  %v237 = vrcp.pop %v217
  %v238 = vmul.f32 1.0, %v237
  %v239 = vrcp.pop %v218
  %v240 = vmul.f32 1.0, %v239
  %v241 = vrcp.pop %v219
  %v242 = vmul.f32 1.0, %v241
  %v243 = vrcp.pop %v220
  %v244 = vmul.f32 1.0, %v243
  %v245 = vrcp.pop %v221
  %v246 = vmul.f32 1.0, %v245
  %v247 = vrcp.pop %v222
  %v248 = vmul.f32 1.0, %v247
  %v249 = vrcp.pop %v223
  %v250 = vmul.f32 1.0, %v249
  %v251 = vrcp.pop %v224
  %v252 = vmul.f32 1.0, %v251
  %v253 = vrcp.pop %v225
  %v254 = vmul.f32 1.0, %v253
  %v255 = vrcp.pop %v226
  %v256 = vmul.f32 1.0, %v255
  %v257 = vrcp.pop %v227
  %v258 = vmul.f32 1.0, %v257
  %v259 = vrcp.pop %v228
  %v260 = vmul.f32 1.0, %v259
  %v277 = vlaneseq
  %v278 = vand.u32 %v277, 127
  %v279 = vlaneseq
  %v280 = vshrl.u32 %v279, 7
  %v281 = vsub.s32 %v278, %v280
  %v282 = vrot.slane %v230, %v281
  %v283 = vadd.s32 %v278, 4294967288
  %v284 = vlaneseq
  %v285 = vshrl.u32 %v284, 7
  %v286 = vsub.s32 %v283, %v285
  %v287 = vrot.slane %v232, %v286
  %vm288 = vcmask 130112
  %v289 = vsel %vm288, %v287, %v282
  %v290 = vadd.s32 %v278, 4294967280
  %v291 = vlaneseq
  %v292 = vshrl.u32 %v291, 7
  %v293 = vsub.s32 %v290, %v292
  %v294 = vrot.slane %v234, %v293
  %vm295 = vcmask 195712
  %v296 = vsel %vm295, %v294, %v289
  %v297 = vadd.s32 %v278, 4294967272
  %v298 = vlaneseq
  %v299 = vshrl.u32 %v298, 7
  %v300 = vsub.s32 %v297, %v299
  %v301 = vrot.slane %v236, %v300
  %vm302 = vcmask 261312
  %v303 = vsel %vm302, %v301, %v296
  %v304 = vadd.s32 %v278, 4294967264
  %v305 = vlaneseq
  %v306 = vshrl.u32 %v305, 7
  %v307 = vsub.s32 %v304, %v306
  %v308 = vrot.slane %v238, %v307
  %vm309 = vcmask 326912
  %v310 = vsel %vm309, %v308, %v303
  %v311 = vadd.s32 %v278, 4294967256
  %v312 = vlaneseq
  %v313 = vshrl.u32 %v312, 7
  %v314 = vsub.s32 %v311, %v313
  %v315 = vrot.slane %v240, %v314
  %vm316 = vcmask 392512
  %v317 = vsel %vm316, %v315, %v310
  %v318 = vadd.s32 %v278, 4294967248
  %v319 = vlaneseq
  %v320 = vshrl.u32 %v319, 7
  %v321 = vsub.s32 %v318, %v320
  %v322 = vrot.slane %v242, %v321
  %vm323 = vcmask 458112
  %v324 = vsel %vm323, %v322, %v317
  %v325 = vadd.s32 %v278, 4294967240
  %v326 = vlaneseq
  %v327 = vshrl.u32 %v326, 7
  %v328 = vsub.s32 %v325, %v327
  %v329 = vrot.slane %v244, %v328
  %vm330 = vcmask 523712
  %v331 = vsel %vm330, %v329, %v324
  %v332 = vadd.s32 %v278, 4294967232
  %v333 = vlaneseq
  %v334 = vshrl.u32 %v333, 7
  %v335 = vsub.s32 %v332, %v334
  %v336 = vrot.slane %v246, %v335
  %vm337 = vcmask 589312
  %v338 = vsel %vm337, %v336, %v331
  %v339 = vadd.s32 %v278, 4294967224
  %v340 = vlaneseq
  %v341 = vshrl.u32 %v340, 7
  %v342 = vsub.s32 %v339, %v341
  %v343 = vrot.slane %v248, %v342
  %vm344 = vcmask 654912
  %v345 = vsel %vm344, %v343, %v338
  %v346 = vadd.s32 %v278, 4294967216
  %v347 = vlaneseq
  %v348 = vshrl.u32 %v347, 7
  %v349 = vsub.s32 %v346, %v348
  %v350 = vrot.slane %v250, %v349
  %vm351 = vcmask 720512
  %v352 = vsel %vm351, %v350, %v345
  %v353 = vadd.s32 %v278, 4294967208
  %v354 = vlaneseq
  %v355 = vshrl.u32 %v354, 7
  %v356 = vsub.s32 %v353, %v355
  %v357 = vrot.slane %v252, %v356
  %vm358 = vcmask 786112
  %v359 = vsel %vm358, %v357, %v352
  %v360 = vadd.s32 %v278, 4294967200
  %v361 = vlaneseq
  %v362 = vshrl.u32 %v361, 7
  %v363 = vsub.s32 %v360, %v362
  %v364 = vrot.slane %v254, %v363
  %vm365 = vcmask 851712
  %v366 = vsel %vm365, %v364, %v359
  %v367 = vadd.s32 %v278, 4294967192
  %v368 = vlaneseq
  %v369 = vshrl.u32 %v368, 7
  %v370 = vsub.s32 %v367, %v369
  %v371 = vrot.slane %v256, %v370
  %vm372 = vcmask 917312
  %v373 = vsel %vm372, %v371, %v366
  %v374 = vadd.s32 %v278, 4294967184
  %v375 = vlaneseq
  %v376 = vshrl.u32 %v375, 7
  %v377 = vsub.s32 %v374, %v376
  %v378 = vrot.slane %v258, %v377
  %vm379 = vcmask 982912
  %v380 = vsel %vm379, %v378, %v373
  %v381 = vadd.s32 %v278, 4294967176
  %v382 = vlaneseq
  %v383 = vshrl.u32 %v382, 7
  %v384 = vsub.s32 %v381, %v383
  %v385 = vrot.slane %v260, %v384
  %vm386 = vcmask 1048512
  %v387 = vsel %vm386, %v385, %v380
  %389 = vst [vmem:[%s5] sm:$0x1] %v387
  // Predicated region
  $region22: #{speculation_verifier.1} parent=0 // pred_check
    _
  $region23: #{speculation_verifier.1} parent=0 // pred_check_branch
    %391 = sbr.rel (0) target = $region25
  $region24: #{speculation_verifier.1} parent=0 // pred_region
    _
  $region25: #{speculation_verifier.1} parent=0 // pred_fallthru
    _
  // Predicated region
  $region26: #{speculation_verifier.1} parent=0 // pred_check
    _
  $region27: #{speculation_verifier.1} parent=0 // pred_check_branch
    %393 = sbr.rel (0) target = $region29
  $region28: #{speculation_verifier.1} parent=0 // pred_region
    _
  $region29: #{speculation_verifier.1} parent=0 // pred_fallthru
    _

</llo_original>
